<compile_context>
chip_gen: v5e
topology: v5e:2x2
jax: 0.10.0
libtpu: 0.0.40
codegen_flags: <defaults>
</compile_context>

<pallas_src>
import functools

import jax
import jax.numpy as jnp
from jax import lax
from jax.experimental import pallas as pl
from jax.experimental.pallas import tpu as pltpu


def _iou(box_a, box_b):
    """Vectorized calculate_iou for xyxy boxes; each coord is (T, 1, 49)."""
    ax1, ay1, ax2, ay2 = box_a
    bx1, by1, bx2, by2 = box_b
    iw = jnp.minimum(ax2, bx2) - jnp.maximum(ax1, bx1)
    ih = jnp.minimum(ay2, by2) - jnp.maximum(ay1, by1)
    inter = iw * ih
    area_a = (ax2 - ax1) * (ay2 - ay1)
    area_b = (bx2 - bx1) * (by2 - by1)
    union = area_a + area_b - inter
    # Reference returns 0 unless the boxes strictly overlap; safe denominator so the
    # unselected branch never produces inf/NaN.
    valid = (iw > 0.0) & (ih > 0.0)
    return jnp.where(valid, inter / jnp.where(valid, union, 1.0), 0.0)


def _to_xyxy(box, n_idx, m_idx):
    """box: (T, 4, 49) slab [x, y, w, h] -> xyxy coords, each (T, 1, 49)."""
    x = box[:, 0:1, :]
    y = box[:, 1:2, :]
    w = box[:, 2:3, :]
    h = box[:, 3:4, :]
    cx = (x + n_idx) / 7.0
    cy = (y + m_idx) / 7.0
    hw = 0.5 * w
    hh = 0.5 * h
    return cx - hw, cy - hh, cx + hw, cy + hh


def _coor_term(p, l):
    """p, l: (T, 4, 49) slabs [x, y, w, h] -> weighted coord loss, (T, 1, 49)."""
    dxy = p[:, 0:2, :] - l[:, 0:2, :]
    sxy = jnp.sum(dxy * dxy, axis=1, keepdims=True)
    dwh = jnp.sqrt(p[:, 2:4, :]) - jnp.sqrt(l[:, 2:4, :])
    swh = jnp.sum(dwh * dwh, axis=1, keepdims=True)
    return 5.0 * (sxy + swh)


def _yolov1_loss_kernel(pred_ref, lab_ref, out_ref, *, batch_size, tile_b):
    f32 = jnp.float32

    # Per-cell grid coordinates: flat cell index c = m * 7 + n, shape (1, 1, 49).
    c = lax.broadcasted_iota(jnp.int32, (1, 1, 49), 2).astype(f32)
    m_idx = jnp.floor(c / 7.0)          # exact for multiples of 7 in f32
    n_idx = c - 7.0 * m_idx

    # Channel slabs as individual Ref slices (no whole-tile materialization), each cast
    # to f32 on its own so bf16 inputs work unchanged.
    p_b1 = pred_ref[:, 0:4, :].astype(f32)      # box 1: x, y, w, h
    p_c1 = pred_ref[:, 4:5, :].astype(f32)      # box 1 confidence
    p_b2 = pred_ref[:, 5:9, :].astype(f32)      # box 2: x, y, w, h
    p_c2 = pred_ref[:, 9:10, :].astype(f32)     # box 2 confidence
    l_b1 = lab_ref[:, 0:4, :].astype(f32)       # gt box (and coord target for box 1)
    l_conf = lab_ref[:, 4:5, :].astype(f32)     # objectness label
    l_b2 = lab_ref[:, 5:9, :].astype(f32)       # coord target for box 2

    box1 = _to_xyxy(p_b1, n_idx, m_idx)
    box2 = _to_xyxy(p_b2, n_idx, m_idx)
    boxg = _to_xyxy(l_b1, n_idx, m_idx)
    iou1 = _iou(box1, boxg)
    iou2 = _iou(box2, boxg)
    resp1 = iou1 >= iou2                        # box 1 is the responsible predictor

    coor1 = _coor_term(p_b1, l_b1)
    coor2 = _coor_term(p_b2, l_b2)

    e1 = p_c1 - iou1
    e2 = p_c2 - iou2
    d1 = e1 * e1
    d2 = e2 * e2

    dcls = pred_ref[:, 10:30, :].astype(f32) - lab_ref[:, 10:30, :].astype(f32)
    class_l = jnp.sum(dcls * dcls, axis=1, keepdims=True)

    obj_loss = jnp.where(resp1, coor1 + d1 + 0.5 * d2, coor2 + d2 + 0.5 * d1) + class_l
    noobj_loss = 0.5 * (p_c1 * p_c1 + p_c2 * p_c2)

    has_obj = l_conf == 1.0                     # exact test, as in the reference
    per_cell = jnp.where(has_obj, obj_loss, noobj_loss)    # (tile_b, 1, 49)

    # Mask out-of-range batch rows of a partial tail block (static Python check).
    if batch_size % tile_b != 0:
        row = lax.broadcasted_iota(jnp.int32, (tile_b, 1, 1), 0)
        valid = (pl.program_id(0) * tile_b + row) < batch_size
        per_cell = jnp.where(valid, per_cell, 0.0)

    # One scalar partial per block; writeback is a single lane-dense (1, 8, 128) tile.
    block_sum = jnp.sum(per_cell)
    out_ref[...] = jnp.full(out_ref.shape, block_sum, dtype=out_ref.dtype)


def yolov1_loss(pred, labels, *, max_tile_b=256):
    """pred, labels: (B, 30, 7, 7). Returns the scalar mean loss over the batch."""
    assert pred.shape == labels.shape
    assert pred.shape[1:] == (30, 7, 7)
    B = pred.shape[0]

    # Metadata-only reshape: channels -> sublanes (30), grid cells -> lanes (49).
    p = pred.reshape(B, 30, 49)
    l = labels.reshape(B, 30, 49)

    # >= 2 "parallel" blocks whenever B >= 2 (v7x dual TensorCore), capped so the
    # double-buffered footprint (tile_b * 32 * 128 * 4 B per input per buffer) stays
    # well inside the explicit 32 MiB scoped-VMEM limit on every generation.
    tile_b = max(1, min(max_tile_b, (B + 1) // 2))
    num_blocks = (B + tile_b - 1) // tile_b

    kernel = functools.partial(_yolov1_loss_kernel, batch_size=B, tile_b=tile_b)
    partials = pl.pallas_call(
        kernel,
        out_shape=jax.ShapeDtypeStruct((num_blocks, 8, 128), jnp.float32),
        grid=(num_blocks,),
        in_specs=[
            pl.BlockSpec((tile_b, 30, 49), lambda i: (i, 0, 0)),
            pl.BlockSpec((tile_b, 30, 49), lambda i: (i, 0, 0)),
        ],
        out_specs=pl.BlockSpec((1, 8, 128), lambda i: (i, 0, 0)),
        compiler_params=pltpu.CompilerParams(
            dimension_semantics=("parallel",),
            vmem_limit_bytes=32 * 1024 * 1024,
        ),
    )(p, l)

    # num_blocks scalar partials; divide by batch size only (as in the reference).
    return jnp.sum(partials[:, 0, 0]) / B


def yolov1_loss_ref(pred, labels):
    """Vectorized pure-JAX translation of the PyTorch Loss_yolov1 (verification only)."""
    B = pred.shape[0]
    p = pred.astype(jnp.float32).reshape(B, 30, 49)
    l = labels.astype(jnp.float32).reshape(B, 30, 49)
    c = jnp.arange(49, dtype=jnp.float32)
    m = jnp.floor(c / 7.0)
    n = c - 7.0 * m

    def xyxy(b):  # b: (B, 4, 49)
        cx = (b[:, 0] + n) / 7.0
        cy = (b[:, 1] + m) / 7.0
        return cx - b[:, 2] / 2, cy - b[:, 3] / 2, cx + b[:, 2] / 2, cy + b[:, 3] / 2

    def iou(a, b):
        iw = jnp.minimum(a[2], b[2]) - jnp.maximum(a[0], b[0])
        ih = jnp.minimum(a[3], b[3]) - jnp.maximum(a[1], b[1])
        inter = iw * ih
        union = (a[2] - a[0]) * (a[3] - a[1]) + (b[2] - b[0]) * (b[3] - b[1]) - inter
        ok = (iw > 0) & (ih > 0)
        return jnp.where(ok, inter / jnp.where(ok, union, 1.0), 0.0)

    b1, b2, bg = xyxy(p[:, 0:4]), xyxy(p[:, 5:9]), xyxy(l[:, 0:4])
    iou1, iou2 = iou(b1, bg), iou(b2, bg)
    resp1 = iou1 >= iou2

    def coor(pb, lb):
        return 5.0 * (jnp.sum((pb[:, 0:2] - lb[:, 0:2]) ** 2, axis=1)
                      + jnp.sum((jnp.sqrt(pb[:, 2:4]) - jnp.sqrt(lb[:, 2:4])) ** 2, axis=1))

    coor1, coor2 = coor(p[:, 0:4], l[:, 0:4]), coor(p[:, 5:9], l[:, 5:9])
    d1 = (p[:, 4] - iou1) ** 2
    d2 = (p[:, 9] - iou2) ** 2
    class_l = jnp.sum((p[:, 10:30] - l[:, 10:30]) ** 2, axis=1)
    obj = jnp.where(resp1, coor1 + d1 + 0.5 * d2, coor2 + d2 + 0.5 * d1) + class_l
    noobj = 0.5 * (p[:, 4] ** 2 + p[:, 9] ** 2)
    per_cell = jnp.where(l[:, 4] == 1.0, obj, noobj)
    return jnp.sum(per_cell) / B


if __name__ == "__main__":
    B = 2
    key = jax.random.PRNGKey(0)
    kp, kl = jax.random.split(key)

    # Positive box/class values (the reference takes sqrt of the w/h channels).
    pred = jax.random.uniform(kp, (B, 30, 7, 7), jnp.float32, minval=0.05, maxval=0.95)
    labels = jax.random.uniform(kl, (B, 30, 7, 7), jnp.float32, minval=0.05, maxval=0.95)

    # Object confidence channel must be exactly 1.0 at object cells, 0 elsewhere.
    conf = jnp.zeros((B, 7, 7), jnp.float32)
    conf = conf.at[0, 2, 3].set(1.0)
    conf = conf.at[0, 5, 1].set(1.0)
    conf = conf.at[1, 0, 0].set(1.0)
    conf = conf.at[1, 6, 6].set(1.0)
    labels = labels.at[:, 4, :, :].set(conf)

    loss = jax.jit(yolov1_loss)(pred, labels)
    jax.block_until_ready(loss)
    assert jnp.isfinite(loss)

    ref = yolov1_loss_ref(pred, labels)
    assert jnp.allclose(loss, ref, rtol=1e-4, atol=1e-4), (loss, ref)
    print("KERNEL_OK")
</pallas_src>

<mosaic_0001>
module attributes {stable_mosaic.version = 11 : i64} {
  func.func @_yolov1_loss_kernel(%arg0: i32, %arg1: memref<1x30x49xf32, #tpu.memory_space<vmem>>, %arg2: memref<1x30x49xf32, #tpu.memory_space<vmem>>, %arg3: memref<1x8x128xf32, #tpu.memory_space<vmem>>) attributes {dimension_semantics = [#tpu.dimension_semantics<parallel>], iteration_bounds = array<i64: 2>, scalar_prefetch = 0 : i64, scratch_operands = 0 : i64, tpu.core_type = #tpu.core_type<tc>, window_params = [{transform_indices = @transform_0, window_bounds = array<i64: 1, 30, 49>}, {transform_indices = @transform_1, window_bounds = array<i64: 1, 30, 49>}, {transform_indices = @transform_2, window_bounds = array<i64: 1, 8, 128>}]} {
    %0 = tpu.iota {dimensions = array<i32: 2>} : vector<1x1x49xi32>
    %1 = arith.sitofp %0 : vector<1x1x49xi32> to vector<1x1x49xf32>
    %cst = arith.constant 7.000000e+00 : f32
    %2 = vector.broadcast %cst : f32 to vector<1x1x49xf32>
    %3 = arith.divf %1, %2 : vector<1x1x49xf32>
    %4 = math.floor %3 : vector<1x1x49xf32>
    %cst_0 = arith.constant 7.000000e+00 : f32
    %5 = vector.broadcast %cst_0 : f32 to vector<1x1x49xf32>
    %6 = arith.mulf %5, %4 : vector<1x1x49xf32>
    %7 = arith.subf %1, %6 : vector<1x1x49xf32>
    %c0 = arith.constant 0 : index
    %c0_1 = arith.constant 0 : index
    %c0_2 = arith.constant 0 : index
    %8 = vector.load %arg1[%c0, %c0_1, %c0_2] : memref<1x30x49xf32, #tpu.memory_space<vmem>>, vector<1x4x49xf32>
    %c0_3 = arith.constant 0 : index
    %c4 = arith.constant 4 : index
    %c0_4 = arith.constant 0 : index
    %9 = vector.load %arg1[%c0_3, %c4, %c0_4] : memref<1x30x49xf32, #tpu.memory_space<vmem>>, vector<1x1x49xf32>
    %c0_5 = arith.constant 0 : index
    %c5 = arith.constant 5 : index
    %c0_6 = arith.constant 0 : index
    %10 = vector.load %arg1[%c0_5, %c5, %c0_6] : memref<1x30x49xf32, #tpu.memory_space<vmem>>, vector<1x4x49xf32>
    %c0_7 = arith.constant 0 : index
    %c9 = arith.constant 9 : index
    %c0_8 = arith.constant 0 : index
    %11 = vector.load %arg1[%c0_7, %c9, %c0_8] : memref<1x30x49xf32, #tpu.memory_space<vmem>>, vector<1x1x49xf32>
    %c0_9 = arith.constant 0 : index
    %c0_10 = arith.constant 0 : index
    %c0_11 = arith.constant 0 : index
    %12 = vector.load %arg2[%c0_9, %c0_10, %c0_11] : memref<1x30x49xf32, #tpu.memory_space<vmem>>, vector<1x4x49xf32>
    %c0_12 = arith.constant 0 : index
    %c4_13 = arith.constant 4 : index
    %c0_14 = arith.constant 0 : index
    %13 = vector.load %arg2[%c0_12, %c4_13, %c0_14] : memref<1x30x49xf32, #tpu.memory_space<vmem>>, vector<1x1x49xf32>
    %c0_15 = arith.constant 0 : index
    %c5_16 = arith.constant 5 : index
    %c0_17 = arith.constant 0 : index
    %14 = vector.load %arg2[%c0_15, %c5_16, %c0_17] : memref<1x30x49xf32, #tpu.memory_space<vmem>>, vector<1x4x49xf32>
    %15 = vector.extract_strided_slice %8 {offsets = [0, 0, 0], sizes = [1, 1, 49], strides = [1, 1, 1]} : vector<1x4x49xf32> to vector<1x1x49xf32>
    %16 = vector.extract_strided_slice %8 {offsets = [0, 1, 0], sizes = [1, 1, 49], strides = [1, 1, 1]} : vector<1x4x49xf32> to vector<1x1x49xf32>
    %17 = vector.extract_strided_slice %8 {offsets = [0, 2, 0], sizes = [1, 1, 49], strides = [1, 1, 1]} : vector<1x4x49xf32> to vector<1x1x49xf32>
    %18 = vector.extract_strided_slice %8 {offsets = [0, 3, 0], sizes = [1, 1, 49], strides = [1, 1, 1]} : vector<1x4x49xf32> to vector<1x1x49xf32>
    %19 = arith.addf %15, %7 : vector<1x1x49xf32>
    %cst_18 = arith.constant 7.000000e+00 : f32
    %20 = vector.broadcast %cst_18 : f32 to vector<1x1x49xf32>
    %21 = arith.divf %19, %20 : vector<1x1x49xf32>
    %22 = arith.addf %16, %4 : vector<1x1x49xf32>
    %cst_19 = arith.constant 7.000000e+00 : f32
    %23 = vector.broadcast %cst_19 : f32 to vector<1x1x49xf32>
    %24 = arith.divf %22, %23 : vector<1x1x49xf32>
    %cst_20 = arith.constant 5.000000e-01 : f32
    %25 = vector.broadcast %cst_20 : f32 to vector<1x1x49xf32>
    %26 = arith.mulf %25, %17 : vector<1x1x49xf32>
    %cst_21 = arith.constant 5.000000e-01 : f32
    %27 = vector.broadcast %cst_21 : f32 to vector<1x1x49xf32>
    %28 = arith.mulf %27, %18 : vector<1x1x49xf32>
    %29 = arith.subf %21, %26 : vector<1x1x49xf32>
    %30 = arith.subf %24, %28 : vector<1x1x49xf32>
    %31 = arith.addf %21, %26 : vector<1x1x49xf32>
    %32 = arith.addf %24, %28 : vector<1x1x49xf32>
    %33 = vector.extract_strided_slice %10 {offsets = [0, 0, 0], sizes = [1, 1, 49], strides = [1, 1, 1]} : vector<1x4x49xf32> to vector<1x1x49xf32>
    %34 = vector.extract_strided_slice %10 {offsets = [0, 1, 0], sizes = [1, 1, 49], strides = [1, 1, 1]} : vector<1x4x49xf32> to vector<1x1x49xf32>
    %35 = vector.extract_strided_slice %10 {offsets = [0, 2, 0], sizes = [1, 1, 49], strides = [1, 1, 1]} : vector<1x4x49xf32> to vector<1x1x49xf32>
    %36 = vector.extract_strided_slice %10 {offsets = [0, 3, 0], sizes = [1, 1, 49], strides = [1, 1, 1]} : vector<1x4x49xf32> to vector<1x1x49xf32>
    %37 = arith.addf %33, %7 : vector<1x1x49xf32>
    %cst_22 = arith.constant 7.000000e+00 : f32
    %38 = vector.broadcast %cst_22 : f32 to vector<1x1x49xf32>
    %39 = arith.divf %37, %38 : vector<1x1x49xf32>
    %40 = arith.addf %34, %4 : vector<1x1x49xf32>
    %cst_23 = arith.constant 7.000000e+00 : f32
    %41 = vector.broadcast %cst_23 : f32 to vector<1x1x49xf32>
    %42 = arith.divf %40, %41 : vector<1x1x49xf32>
    %cst_24 = arith.constant 5.000000e-01 : f32
    %43 = vector.broadcast %cst_24 : f32 to vector<1x1x49xf32>
    %44 = arith.mulf %43, %35 : vector<1x1x49xf32>
    %cst_25 = arith.constant 5.000000e-01 : f32
    %45 = vector.broadcast %cst_25 : f32 to vector<1x1x49xf32>
    %46 = arith.mulf %45, %36 : vector<1x1x49xf32>
    %47 = arith.subf %39, %44 : vector<1x1x49xf32>
    %48 = arith.subf %42, %46 : vector<1x1x49xf32>
    %49 = arith.addf %39, %44 : vector<1x1x49xf32>
    %50 = arith.addf %42, %46 : vector<1x1x49xf32>
    %51 = vector.extract_strided_slice %12 {offsets = [0, 0, 0], sizes = [1, 1, 49], strides = [1, 1, 1]} : vector<1x4x49xf32> to vector<1x1x49xf32>
    %52 = vector.extract_strided_slice %12 {offsets = [0, 1, 0], sizes = [1, 1, 49], strides = [1, 1, 1]} : vector<1x4x49xf32> to vector<1x1x49xf32>
    %53 = vector.extract_strided_slice %12 {offsets = [0, 2, 0], sizes = [1, 1, 49], strides = [1, 1, 1]} : vector<1x4x49xf32> to vector<1x1x49xf32>
    %54 = vector.extract_strided_slice %12 {offsets = [0, 3, 0], sizes = [1, 1, 49], strides = [1, 1, 1]} : vector<1x4x49xf32> to vector<1x1x49xf32>
    %55 = arith.addf %51, %7 : vector<1x1x49xf32>
    %cst_26 = arith.constant 7.000000e+00 : f32
    %56 = vector.broadcast %cst_26 : f32 to vector<1x1x49xf32>
    %57 = arith.divf %55, %56 : vector<1x1x49xf32>
    %58 = arith.addf %52, %4 : vector<1x1x49xf32>
    %cst_27 = arith.constant 7.000000e+00 : f32
    %59 = vector.broadcast %cst_27 : f32 to vector<1x1x49xf32>
    %60 = arith.divf %58, %59 : vector<1x1x49xf32>
    %cst_28 = arith.constant 5.000000e-01 : f32
    %61 = vector.broadcast %cst_28 : f32 to vector<1x1x49xf32>
    %62 = arith.mulf %61, %53 : vector<1x1x49xf32>
    %cst_29 = arith.constant 5.000000e-01 : f32
    %63 = vector.broadcast %cst_29 : f32 to vector<1x1x49xf32>
    %64 = arith.mulf %63, %54 : vector<1x1x49xf32>
    %65 = arith.subf %57, %62 : vector<1x1x49xf32>
    %66 = arith.subf %60, %64 : vector<1x1x49xf32>
    %67 = arith.addf %57, %62 : vector<1x1x49xf32>
    %68 = arith.addf %60, %64 : vector<1x1x49xf32>
    %69 = arith.minimumf %31, %67 : vector<1x1x49xf32>
    %70 = arith.maximumf %29, %65 : vector<1x1x49xf32>
    %71 = arith.subf %69, %70 : vector<1x1x49xf32>
    %72 = arith.minimumf %32, %68 : vector<1x1x49xf32>
    %73 = arith.maximumf %30, %66 : vector<1x1x49xf32>
    %74 = arith.subf %72, %73 : vector<1x1x49xf32>
    %75 = arith.mulf %71, %74 : vector<1x1x49xf32>
    %76 = arith.subf %31, %29 : vector<1x1x49xf32>
    %77 = arith.subf %32, %30 : vector<1x1x49xf32>
    %78 = arith.mulf %76, %77 : vector<1x1x49xf32>
    %79 = arith.subf %67, %65 : vector<1x1x49xf32>
    %80 = arith.subf %68, %66 : vector<1x1x49xf32>
    %81 = arith.mulf %79, %80 : vector<1x1x49xf32>
    %82 = arith.addf %78, %81 : vector<1x1x49xf32>
    %83 = arith.subf %82, %75 : vector<1x1x49xf32>
    %cst_30 = arith.constant 0.000000e+00 : f32
    %84 = vector.broadcast %cst_30 : f32 to vector<1x1x49xf32>
    %85 = arith.cmpf ogt, %71, %84 : vector<1x1x49xf32>
    %cst_31 = arith.constant 0.000000e+00 : f32
    %86 = vector.broadcast %cst_31 : f32 to vector<1x1x49xf32>
    %87 = arith.cmpf ogt, %74, %86 : vector<1x1x49xf32>
    %88 = arith.andi %85, %87 : vector<1x1x49xi1>
    %cst_32 = arith.constant 1.000000e+00 : f32
    %89 = vector.broadcast %cst_32 : f32 to vector<1x1x49xf32>
    %90 = arith.select %88, %83, %89 : vector<1x1x49xi1>, vector<1x1x49xf32>
    %91 = arith.divf %75, %90 : vector<1x1x49xf32>
    %cst_33 = arith.constant 0.000000e+00 : f32
    %92 = vector.broadcast %cst_33 : f32 to vector<1x1x49xf32>
    %93 = arith.select %88, %91, %92 : vector<1x1x49xi1>, vector<1x1x49xf32>
    %94 = arith.minimumf %49, %67 : vector<1x1x49xf32>
    %95 = arith.maximumf %47, %65 : vector<1x1x49xf32>
    %96 = arith.subf %94, %95 : vector<1x1x49xf32>
    %97 = arith.minimumf %50, %68 : vector<1x1x49xf32>
    %98 = arith.maximumf %48, %66 : vector<1x1x49xf32>
    %99 = arith.subf %97, %98 : vector<1x1x49xf32>
    %100 = arith.mulf %96, %99 : vector<1x1x49xf32>
    %101 = arith.subf %49, %47 : vector<1x1x49xf32>
    %102 = arith.subf %50, %48 : vector<1x1x49xf32>
    %103 = arith.mulf %101, %102 : vector<1x1x49xf32>
    %104 = arith.subf %67, %65 : vector<1x1x49xf32>
    %105 = arith.subf %68, %66 : vector<1x1x49xf32>
    %106 = arith.mulf %104, %105 : vector<1x1x49xf32>
    %107 = arith.addf %103, %106 : vector<1x1x49xf32>
    %108 = arith.subf %107, %100 : vector<1x1x49xf32>
    %cst_34 = arith.constant 0.000000e+00 : f32
    %109 = vector.broadcast %cst_34 : f32 to vector<1x1x49xf32>
    %110 = arith.cmpf ogt, %96, %109 : vector<1x1x49xf32>
    %cst_35 = arith.constant 0.000000e+00 : f32
    %111 = vector.broadcast %cst_35 : f32 to vector<1x1x49xf32>
    %112 = arith.cmpf ogt, %99, %111 : vector<1x1x49xf32>
    %113 = arith.andi %110, %112 : vector<1x1x49xi1>
    %cst_36 = arith.constant 1.000000e+00 : f32
    %114 = vector.broadcast %cst_36 : f32 to vector<1x1x49xf32>
    %115 = arith.select %113, %108, %114 : vector<1x1x49xi1>, vector<1x1x49xf32>
    %116 = arith.divf %100, %115 : vector<1x1x49xf32>
    %cst_37 = arith.constant 0.000000e+00 : f32
    %117 = vector.broadcast %cst_37 : f32 to vector<1x1x49xf32>
    %118 = arith.select %113, %116, %117 : vector<1x1x49xi1>, vector<1x1x49xf32>
    %119 = arith.cmpf oge, %93, %118 : vector<1x1x49xf32>
    %120 = vector.extract_strided_slice %8 {offsets = [0, 0, 0], sizes = [1, 2, 49], strides = [1, 1, 1]} : vector<1x4x49xf32> to vector<1x2x49xf32>
    %121 = vector.extract_strided_slice %12 {offsets = [0, 0, 0], sizes = [1, 2, 49], strides = [1, 1, 1]} : vector<1x4x49xf32> to vector<1x2x49xf32>
    %122 = arith.subf %120, %121 : vector<1x2x49xf32>
    %123 = arith.mulf %122, %122 : vector<1x2x49xf32>
    %cst_38 = arith.constant dense<0.000000e+00> : vector<1x49xf32>
    %124 = vector.multi_reduction <add>, %123, %cst_38 [1] : vector<1x2x49xf32> to vector<1x49xf32>
    %125 = vector.shape_cast %124 : vector<1x49xf32> to vector<1x1x49xf32>
    %126 = vector.extract_strided_slice %8 {offsets = [0, 2, 0], sizes = [1, 2, 49], strides = [1, 1, 1]} : vector<1x4x49xf32> to vector<1x2x49xf32>
    %127 = math.sqrt %126 : vector<1x2x49xf32>
    %128 = vector.extract_strided_slice %12 {offsets = [0, 2, 0], sizes = [1, 2, 49], strides = [1, 1, 1]} : vector<1x4x49xf32> to vector<1x2x49xf32>
    %129 = math.sqrt %128 : vector<1x2x49xf32>
    %130 = arith.subf %127, %129 : vector<1x2x49xf32>
    %131 = arith.mulf %130, %130 : vector<1x2x49xf32>
    %cst_39 = arith.constant dense<0.000000e+00> : vector<1x49xf32>
    %132 = vector.multi_reduction <add>, %131, %cst_39 [1] : vector<1x2x49xf32> to vector<1x49xf32>
    %133 = vector.shape_cast %132 : vector<1x49xf32> to vector<1x1x49xf32>
    %134 = arith.addf %125, %133 : vector<1x1x49xf32>
    %cst_40 = arith.constant 5.000000e+00 : f32
    %135 = vector.broadcast %cst_40 : f32 to vector<1x1x49xf32>
    %136 = arith.mulf %135, %134 : vector<1x1x49xf32>
    %137 = vector.extract_strided_slice %10 {offsets = [0, 0, 0], sizes = [1, 2, 49], strides = [1, 1, 1]} : vector<1x4x49xf32> to vector<1x2x49xf32>
    %138 = vector.extract_strided_slice %14 {offsets = [0, 0, 0], sizes = [1, 2, 49], strides = [1, 1, 1]} : vector<1x4x49xf32> to vector<1x2x49xf32>
    %139 = arith.subf %137, %138 : vector<1x2x49xf32>
    %140 = arith.mulf %139, %139 : vector<1x2x49xf32>
    %cst_41 = arith.constant dense<0.000000e+00> : vector<1x49xf32>
    %141 = vector.multi_reduction <add>, %140, %cst_41 [1] : vector<1x2x49xf32> to vector<1x49xf32>
    %142 = vector.shape_cast %141 : vector<1x49xf32> to vector<1x1x49xf32>
    %143 = vector.extract_strided_slice %10 {offsets = [0, 2, 0], sizes = [1, 2, 49], strides = [1, 1, 1]} : vector<1x4x49xf32> to vector<1x2x49xf32>
    %144 = math.sqrt %143 : vector<1x2x49xf32>
    %145 = vector.extract_strided_slice %14 {offsets = [0, 2, 0], sizes = [1, 2, 49], strides = [1, 1, 1]} : vector<1x4x49xf32> to vector<1x2x49xf32>
    %146 = math.sqrt %145 : vector<1x2x49xf32>
    %147 = arith.subf %144, %146 : vector<1x2x49xf32>
    %148 = arith.mulf %147, %147 : vector<1x2x49xf32>
    %cst_42 = arith.constant dense<0.000000e+00> : vector<1x49xf32>
    %149 = vector.multi_reduction <add>, %148, %cst_42 [1] : vector<1x2x49xf32> to vector<1x49xf32>
    %150 = vector.shape_cast %149 : vector<1x49xf32> to vector<1x1x49xf32>
    %151 = arith.addf %142, %150 : vector<1x1x49xf32>
    %cst_43 = arith.constant 5.000000e+00 : f32
    %152 = vector.broadcast %cst_43 : f32 to vector<1x1x49xf32>
    %153 = arith.mulf %152, %151 : vector<1x1x49xf32>
    %154 = arith.subf %9, %93 : vector<1x1x49xf32>
    %155 = arith.subf %11, %118 : vector<1x1x49xf32>
    %156 = arith.mulf %154, %154 : vector<1x1x49xf32>
    %157 = arith.mulf %155, %155 : vector<1x1x49xf32>
    %c0_44 = arith.constant 0 : index
    %c10 = arith.constant 10 : index
    %c0_45 = arith.constant 0 : index
    %158 = vector.load %arg1[%c0_44, %c10, %c0_45] : memref<1x30x49xf32, #tpu.memory_space<vmem>>, vector<1x20x49xf32>
    %c0_46 = arith.constant 0 : index
    %c10_47 = arith.constant 10 : index
    %c0_48 = arith.constant 0 : index
    %159 = vector.load %arg2[%c0_46, %c10_47, %c0_48] : memref<1x30x49xf32, #tpu.memory_space<vmem>>, vector<1x20x49xf32>
    %160 = arith.subf %158, %159 : vector<1x20x49xf32>
    %161 = arith.mulf %160, %160 : vector<1x20x49xf32>
    %cst_49 = arith.constant dense<0.000000e+00> : vector<1x49xf32>
    %162 = vector.multi_reduction <add>, %161, %cst_49 [1] : vector<1x20x49xf32> to vector<1x49xf32>
    %163 = vector.shape_cast %162 : vector<1x49xf32> to vector<1x1x49xf32>
    %164 = arith.addf %136, %156 : vector<1x1x49xf32>
    %cst_50 = arith.constant 5.000000e-01 : f32
    %165 = vector.broadcast %cst_50 : f32 to vector<1x1x49xf32>
    %166 = arith.mulf %165, %157 : vector<1x1x49xf32>
    %167 = arith.addf %164, %166 : vector<1x1x49xf32>
    %168 = arith.addf %153, %157 : vector<1x1x49xf32>
    %cst_51 = arith.constant 5.000000e-01 : f32
    %169 = vector.broadcast %cst_51 : f32 to vector<1x1x49xf32>
    %170 = arith.mulf %169, %156 : vector<1x1x49xf32>
    %171 = arith.addf %168, %170 : vector<1x1x49xf32>
    %172 = arith.select %119, %167, %171 : vector<1x1x49xi1>, vector<1x1x49xf32>
    %173 = arith.addf %172, %163 : vector<1x1x49xf32>
    %174 = arith.mulf %9, %9 : vector<1x1x49xf32>
    %175 = arith.mulf %11, %11 : vector<1x1x49xf32>
    %176 = arith.addf %174, %175 : vector<1x1x49xf32>
    %cst_52 = arith.constant 5.000000e-01 : f32
    %177 = vector.broadcast %cst_52 : f32 to vector<1x1x49xf32>
    %178 = arith.mulf %177, %176 : vector<1x1x49xf32>
    %cst_53 = arith.constant 1.000000e+00 : f32
    %179 = vector.broadcast %cst_53 : f32 to vector<1x1x49xf32>
    %180 = arith.cmpf oeq, %13, %179 : vector<1x1x49xf32>
    %181 = arith.select %180, %173, %178 : vector<1x1x49xi1>, vector<1x1x49xf32>
    %182 = vector.shape_cast %181 : vector<1x1x49xf32> to vector<1x1x1x49xf32>
    %cst_54 = arith.constant dense<0.000000e+00> : vector<1xf32>
    %183 = vector.multi_reduction <add>, %182, %cst_54 [1, 2, 3] : vector<1x1x1x49xf32> to vector<1xf32>
    %184 = vector.shape_cast %183 : vector<1xf32> to vector<1x1x1x1xf32>
    %185 = vector.extract %184[0, 0, 0, 0] : f32 from vector<1x1x1x1xf32>
    %186 = vector.broadcast %185 : f32 to vector<1x8x128xf32>
    %c0_55 = arith.constant 0 : index
    %c0_56 = arith.constant 0 : index
    %c0_57 = arith.constant 0 : index
    %187 = vector.load %arg3[%c0_55, %c0_56, %c0_57] : memref<1x8x128xf32, #tpu.memory_space<vmem>>, vector<1x8x128xf32>
    tpu.vector_store %arg3[%c0_55, %c0_56, %c0_57], %186 {strides = array<i32>} : memref<1x8x128xf32, #tpu.memory_space<vmem>>, vector<1x8x128xf32>,
    return
  }
  func.func @transform_0(%arg0: i32) -> (i32, i32, i32) {
    %c0_i32 = arith.constant 0 : i32
    %c0_i32_0 = arith.constant 0 : i32
    %c0_i32_1 = arith.constant 0 : i32
    return %arg0, %c0_i32, %c0_i32_0 : i32, i32, i32
  }
  func.func @transform_1(%arg0: i32) -> (i32, i32, i32) {
    %c0_i32 = arith.constant 0 : i32
    %c0_i32_0 = arith.constant 0 : i32
    %c0_i32_1 = arith.constant 0 : i32
    return %arg0, %c0_i32, %c0_i32_0 : i32, i32, i32
  }
  func.func @transform_2(%arg0: i32) -> (i32, i32, i32) {
    %c0_i32 = arith.constant 0 : i32
    %c0_i32_0 = arith.constant 0 : i32
    %c0_i32_1 = arith.constant 0 : i32
    return %arg0, %c0_i32, %c0_i32_0 : i32, i32, i32
  }
}

</mosaic_0001>

<llo_original>
// kernel: yolov1_loss.1
$region0: #{yolov1_loss.1}
  #allocation0 [shape = 'u32[]', space=smem, size = 0x4, offset = 0x4, fixed_abs, tag = 'smem constant byte address 0x4 - core index']
  #allocation1 [shape = 'u32[72,128]{1,0:T(1,128)}', space=vmem, size = 0x9000, scoped, tag = 'internal scratch']
  %s0 = inlined_call_operand.vmem [shape: f32[2,30,49], index: 0, kind: input, shape index: {}]
  %s1 = inlined_call_operand.vmem [shape: f32[2,30,49], index: 1, kind: input, shape index: {}]
  %s2 = inlined_call_operand.vmem [shape: f32[2,8,128], index: 2, kind: output, shape index: {}]
  %s3 = sld [smem:[#allocation0]]
  $region41: #{yolov1_loss.1} parent=0
    _
  %s5 = ssub.s32 1, %s3
  %s6 = scalar_select 0, %s5, %s3
  loop: start=0, step=1, limit=4
  $region2: #{yolov1_loss.1} parent=0 // loop_pre_header
    _
  $region3: #{yolov1_loss.1} parent=0 // loop_header
    %s8 = sphi 0, %s12
    %p9 = scmp.ge.s32.totalorder %s8, 4
    %s18 = sphi 0, %s20
    %s21 = sphi 0, %s18
    %s22 = sphi 0, %s21
    %s38 = sphi 0, %s22
    %s44 = sphi 0, %s46
    %s47 = sphi 0, %s44
    %s48 = sphi 0, %s47
    %s64 = sphi 0, %s48
    %s70 = sphi 0, %s72
    %s73 = sphi 0, %s70
    %s74 = sphi 0, %s73
    %s90 = sphi 0, %s74
  $region4: #{yolov1_loss.1} parent=0 // loop_header_branch
    %11 = sbr.rel (%p9) target = $region8
  $region5: #{yolov1_loss.1} parent=0 // loop_body
    %s13 = ssub.s32 %s8, 1
    %s14 = ssub.s32 %s8, 2
    %s15 = sadd.s32 %s8, 1
    %s16 = ssub.s32 %s8, %s15
    %p17 = scmp.eq.s32.totalorder %s16, 0
    %s19 = sadd.s32 %s18, 1
    %s20 = scalar_select %p17, %s18, %s19
    %p23 = pneg %p17
    %p24 = scmp.eq.s32.totalorder %s8, 1
    %p25 = por %p23, %p24
    %p26 = scmp.ne.s32.totalorder %s18, %s21
    %p27 = scmp.eq.s32.totalorder %s8, 0
    %p28 = por %p26, %p27
    %p29 = scmp.ne.s32.totalorder %s18, %s21
    %p30 = scmp.eq.s32.totalorder %s13, 1
    %p31 = por %p29, %p30
    %p32 = scmp.ne.s32.totalorder %s21, %s22
    %p33 = scmp.eq.s32.totalorder %s13, 0
    %p34 = por %p32, %p33
    %p35 = scmp.ne.s32.totalorder %s21, %s22
    %p36 = scmp.eq.s32.totalorder %s14, 1
    %p37 = por %p35, %p36
    %p39 = scmp.ne.s32.totalorder %s22, %s38
    %p40 = scmp.eq.s32.totalorder %s14, 0
    %p41 = por %p39, %p40
    %s42 = ssub.s32 %s8, %s15
    %p43 = scmp.eq.s32.totalorder %s42, 0
    %s45 = sadd.s32 %s44, 1
    %s46 = scalar_select %p43, %s44, %s45
    %p49 = pneg %p43
    %p50 = scmp.eq.s32.totalorder %s8, 1
    %p51 = por %p49, %p50
    %p52 = scmp.ne.s32.totalorder %s44, %s47
    %p53 = scmp.eq.s32.totalorder %s8, 0
    %p54 = por %p52, %p53
    %p55 = scmp.ne.s32.totalorder %s44, %s47
    %p56 = scmp.eq.s32.totalorder %s13, 1
    %p57 = por %p55, %p56
    %p58 = scmp.ne.s32.totalorder %s47, %s48
    %p59 = scmp.eq.s32.totalorder %s13, 0
    %p60 = por %p58, %p59
    %p61 = scmp.ne.s32.totalorder %s47, %s48
    %p62 = scmp.eq.s32.totalorder %s14, 1
    %p63 = por %p61, %p62
    %p65 = scmp.ne.s32.totalorder %s48, %s64
    %p66 = scmp.eq.s32.totalorder %s14, 0
    %p67 = por %p65, %p66
    %s68 = ssub.s32 %s8, %s15
    %p69 = scmp.eq.s32.totalorder %s68, 0
    %s71 = sadd.s32 %s70, 1
    %s72 = scalar_select %p69, %s70, %s71
    %p75 = pneg %p69
    %p76 = scmp.eq.s32.totalorder %s8, 1
    %p77 = por %p75, %p76
    %p78 = scmp.ne.s32.totalorder %s70, %s73
    %p79 = scmp.eq.s32.totalorder %s8, 0
    %p80 = por %p78, %p79
    %p81 = scmp.ne.s32.totalorder %s70, %s73
    %p82 = scmp.eq.s32.totalorder %s13, 1
    %p83 = por %p81, %p82
    %p84 = scmp.ne.s32.totalorder %s73, %s74
    %p85 = scmp.eq.s32.totalorder %s13, 0
    %p86 = por %p84, %p85
    %p87 = scmp.ne.s32.totalorder %s73, %s74
    %p88 = scmp.eq.s32.totalorder %s14, 1
    %p89 = por %p87, %p88
    %p91 = scmp.ne.s32.totalorder %s74, %s90
    %p92 = scmp.eq.s32.totalorder %s14, 0
    %p93 = por %p91, %p92
    %p94 = scmp.le.s32.totalorder 1, %s8
    %p95 = scmp.lt.s32.totalorder %s8, 3
    %p96 = pnand %p94, %p95
    %p97 = pneg %p96
    // Predicated region
    $region9: #{yolov1_loss.1} parent=5 // pred_check
      _
    $region10: #{yolov1_loss.1} parent=5 // pred_check_branch
      %99 = sbr.rel (%p96) target = $region12
    $region11: #{yolov1_loss.1} parent=5 // pred_region
      %s100 = ssub.s32 %s8, 1
    $region12: #{yolov1_loss.1} parent=5 // pred_fallthru
      _
    %p101 = scmp.lt.s32.totalorder %s8, 2
    // Predicated region
    $region13: #{yolov1_loss.1} parent=5 // pred_check
      %p102 = pneg %p101
    $region14: #{yolov1_loss.1} parent=5 // pred_check_branch
      %104 = sbr.rel (%p102) target = $region16
    $region15: #{yolov1_loss.1} parent=5 // pred_region
      // Predicated region
      $region17: #{yolov1_loss.1} parent=15 // pred_check
        %p105 = pneg %p28
      $region18: #{yolov1_loss.1} parent=15 // pred_check_branch
        %107 = sbr.rel (%p105) target = $region20
      $region19: #{yolov1_loss.1} parent=15 // pred_region
        %p108 = scmp.lt.s32.totalorder %s8, 1
        %s109 = scalar_select %p108, %s8, 1
        %s110 = smul.addr %s109, 4
        %s111 = smul.addr %s110, 8
        %s112 = scalar_lea.vmem %s0, %s111
      $region20: #{yolov1_loss.1} parent=15 // pred_fallthru
        _
      // Predicated region
      $region21: #{yolov1_loss.1} parent=15 // pred_check
        %p113 = pneg %p54
      $region22: #{yolov1_loss.1} parent=15 // pred_check_branch
        %115 = sbr.rel (%p113) target = $region24
      $region23: #{yolov1_loss.1} parent=15 // pred_region
        %p116 = scmp.lt.s32.totalorder %s8, 1
        %s117 = scalar_select %p116, %s8, 1
        %s118 = smul.addr %s117, 4
        %s119 = smul.addr %s118, 8
        %s120 = scalar_lea.vmem %s1, %s119
      $region24: #{yolov1_loss.1} parent=15 // pred_fallthru
        _
    $region16: #{yolov1_loss.1} parent=5 // pred_fallthru
      _
    %p121 = scmp.le.s32.totalorder 1, %s8
    %p122 = scmp.lt.s32.totalorder %s8, 3
    %p123 = pnand %p121, %p122
    %p124 = pneg %p123
    // Predicated region
    $region25: #{yolov1_loss.1} parent=5 // pred_check
      _
    $region26: #{yolov1_loss.1} parent=5 // pred_check_branch
      %126 = sbr.rel (%p123) target = $region28
    $region27: #{yolov1_loss.1} parent=5 // pred_region
      %s127 = ssub.s32 %s8, 1
      %p128 = scmp.lt.s32.totalorder %s13, 1
      %s129 = scalar_select %p128, %s13, 1
      %s130 = smul.addr %s129, 4
      %s131 = smul.addr %s130, 8
      %s132 = scalar_lea.vmem %s0, %s131
      %p133 = pneg %p34
      %p134 = pneg %p31
      %p135 = scmp.lt.s32.totalorder %s13, 1
      %s136 = scalar_select %p135, %s13, 1
      %s137 = smul.addr %s136, 4
      %s138 = smul.addr %s137, 8
      %s139 = scalar_lea.vmem %s1, %s138
      %p140 = pneg %p60
      %p141 = pneg %p57
      %p142 = pneg %p86
      %p143 = pneg %p83
      %p144 = scmp.lt.s32.totalorder %s13, 1
      %s145 = scalar_select %p144, %s13, 1
      %s146 = smul.addr %s145, 8
      %s147 = scalar_lea.vmem %s2, %s146
      %p148 = scmp.lt.s32.totalorder %s13, 1
      %s149 = scalar_select %p148, %s13, 1
      %s150 = smul.addr %s149, 4
      %s151 = smul.addr %s150, 8
      %s152 = scalar_lea.vmem %s0, %s151
      %p153 = scmp.lt.s32.totalorder %s13, 1
      %s154 = scalar_select %p153, %s13, 1
      %s155 = smul.addr %s154, 4
      %s156 = smul.addr %s155, 8
      %s157 = scalar_lea.vmem %s1, %s156
      %p158 = scmp.lt.s32.totalorder %s13, 1
      %s159 = scalar_select %p158, %s13, 1
      %s160 = smul.addr %s159, 8
      %s161 = scalar_lea.vmem %s2, %s160
      %v162 = vlaneseq
      %v163 = vand.u32 %v162, 127
      %v164 = vcvt.s32.f32 %v163
      %v165 = vrcp.pop 7.0
      %v166 = vmul.f32 7.0, %v165
      %v167 = vsub.f32 1.0, %v166
      %v168 = vmul.f32 %v165, %v167
      %v169 = vadd.f32 %v165, %v168
      %vm170 = vweird.f32 %v165
      %v171 = vsel %vm170, %v165, %v169
      %v172 = vmul.f32 %v164, %v171
      %v173 = vfloor.f32 %v172
      %v174 = vmul.f32 %v173, 7.0
      %v175 = vsub.f32 %v164, %v174
      %v176 = vld [vmem:[%s152] sm:$0xf]
      %v177 = vld [vmem:[%s152 + $0x4] sm:$0x1]
      %v178 = vld [vmem:[%s152 + $0x5] sm:$0xf]
      %v179 = vld [vmem:[%s152 + $0x9] sm:$0x1]
      %v180 = vld [vmem:[%s157] sm:$0xf]
      %v181 = vld [vmem:[%s157 + $0x4] sm:$0x1]
      %v182 = vld [vmem:[%s157 + $0x5] sm:$0xf]
      %v183 = vadd.f32 %v176, %v175
      %v184 = vmul.f32 %v183, %v171
      %v185 = vadd.f32 %v176, %v173
      %v186 = vmul.f32 %v185, %v171
      %v187 = vmul.f32 %v176, 0.5
      %v189 = vrot.slane %v187, 2
      %v191 = vsub.f32 %v184, %v189
      %v192 = vsub.f32 %v186, %v189
      %v193 = vadd.f32 %v184, %v189
      %v194 = vadd.f32 %v186, %v189
      %v195 = vadd.f32 %v178, %v175
      %v196 = vmul.f32 %v195, %v171
      %v197 = vadd.f32 %v178, %v173
      %v198 = vmul.f32 %v197, %v171
      %v199 = vmul.f32 %v178, 0.5
      %v201 = vrot.slane %v199, 2
      %v203 = vsub.f32 %v196, %v201
      %v204 = vsub.f32 %v198, %v201
      %v205 = vadd.f32 %v196, %v201
      %v206 = vadd.f32 %v198, %v201
      %v207 = vadd.f32 %v180, %v175
      %v208 = vmul.f32 %v207, %v171
      %v209 = vadd.f32 %v180, %v173
      %v210 = vmul.f32 %v209, %v171
      %v211 = vmul.f32 %v180, 0.5
      %v213 = vrot.slane %v211, 2
      %v215 = vsub.f32 %v208, %v213
      %v216 = vsub.f32 %v210, %v213
      %v217 = vadd.f32 %v208, %v213
      %v218 = vadd.f32 %v210, %v213
      %v219 = vmin.f32 %v193, %v217
      %v220 = vmax.f32 %v191, %v215
      %v221 = vsub.f32 %v219, %v220
      %v222 = vmin.f32 %v194, %v218
      %v223 = vmax.f32 %v192, %v216
      %v224 = vsub.f32 %v222, %v223
      %v226 = vrot.slane %v224, 1
      %v228 = vmul.f32 %v221, %v226
      %v229 = vsub.f32 %v193, %v191
      %v230 = vsub.f32 %v194, %v192
      %v232 = vrot.slane %v230, 1
      %v234 = vmul.f32 %v229, %v232
      %v235 = vsub.f32 %v217, %v215
      %v236 = vsub.f32 %v218, %v216
      %v238 = vrot.slane %v236, 1
      %v240 = vmul.f32 %v235, %v238
      %v241 = vadd.f32 %v234, %v240
      %v242 = vsub.f32 %v241, %v228
      %vm243 = vcmp.gt.f32.partialorder %v221, 0.0
      %vm244 = vcmp.gt.f32.partialorder %v224, 0.0
      %v245 = vsel %vm244, 1, 0
      %v246 = vrot.slane %v245, 1
      %vm247 = vcmp.ne.s32.totalorder %v246, 0
      %vm248 = vmand %vm243, %vm247
      %v249 = vsel %vm248, %v242, 1.0
      %v250 = vrcp.pop %v249
      %v251 = vmul.f32 %v249, %v250
      %v252 = vsub.f32 1.0, %v251
      %v253 = vmul.f32 %v250, %v252
      %v254 = vadd.f32 %v250, %v253
      %vm255 = vweird.f32 %v249
      %vm256 = vweird.f32 %v250
      %vm257 = vmor %vm255, %vm256
      %v258 = vsel %vm257, %v250, %v254
      %v259 = vand.u32 2147483647, %v249
      %vm260 = vcmp.eq.f32.partialorder %v259, 8.507059e+37
      %v261 = vand.u32 %v249, 2147483648
      %v262 = vor.u32 1.1754944e-38, %v261
      %v263 = vsel %vm260, %v262, %v258
      %v264 = vmul.f32 %v228, %v263
      %v265 = vsel %vm248, %v264, 0.0
      %v266 = vmin.f32 %v205, %v217
      %v267 = vmax.f32 %v203, %v215
      %v268 = vsub.f32 %v266, %v267
      %v269 = vmin.f32 %v206, %v218
      %v270 = vmax.f32 %v204, %v216
      %v271 = vsub.f32 %v269, %v270
      %v273 = vrot.slane %v271, 1
      %v275 = vmul.f32 %v268, %v273
      %v276 = vsub.f32 %v205, %v203
      %v277 = vsub.f32 %v206, %v204
      %v279 = vrot.slane %v277, 1
      %v281 = vmul.f32 %v276, %v279
      %v282 = vadd.f32 %v281, %v240
      %v283 = vsub.f32 %v282, %v275
      %vm284 = vcmp.gt.f32.partialorder %v268, 0.0
      %vm285 = vcmp.gt.f32.partialorder %v271, 0.0
      %v286 = vsel %vm285, 1, 0
      %v287 = vrot.slane %v286, 1
      %vm288 = vcmp.ne.s32.totalorder %v287, 0
      %vm289 = vmand %vm284, %vm288
      %v290 = vsel %vm289, %v283, 1.0
      %v291 = vrcp.pop %v290
      %v292 = vmul.f32 %v290, %v291
      %v293 = vsub.f32 1.0, %v292
      %v294 = vmul.f32 %v291, %v293
      %v295 = vadd.f32 %v291, %v294
      %vm296 = vweird.f32 %v290
      %vm297 = vweird.f32 %v291
      %vm298 = vmor %vm296, %vm297
      %v299 = vsel %vm298, %v291, %v295
      %v300 = vand.u32 2147483647, %v290
      %vm301 = vcmp.eq.f32.partialorder %v300, 8.507059e+37
      %v302 = vand.u32 %v290, 2147483648
      %v303 = vor.u32 1.1754944e-38, %v302
      %v304 = vsel %vm301, %v303, %v299
      %v305 = vmul.f32 %v275, %v304
      %v306 = vsel %vm289, %v305, 0.0
      %vm307 = vcmp.ge.f32.partialorder %v265, %v306
      %v308 = vsub.f32 %v176, %v180
      %v309 = vmul.f32 %v308, %v308
      %vm310 = vcmask 394240
      %v311 = vsel %vm310, %v309, 0.0
      %v312 = vrot.slane %v311, 4
      %v313 = vadd.f32 %v311, %v312
      %v314 = vrot.slane %v313, 2
      %v315 = vadd.f32 %v313, %v314
      %v316 = vrot.slane %v315, 1
      %v317 = vadd.f32 %v315, %v316
      %v318 = vrsqrt.pop %v176
      %v319 = vmul.f32 %v318, %v176
      %v320 = vmul.f32 %v319, %v318
      %v321 = vmul.f32 0.5, %v320
      %v322 = vsub.f32 1.5, %v321
      %v323 = vmul.f32 %v318, %v322
      %v324 = vmul.f32 %v176, %v323
      %vm325 = vcmp.eq.f32.partialorder %v176, inf
      %v326 = vsel %vm325, %v176, %v324
      %vm327 = vcmp.eq.f32.partialorder %v176, 0.0
      %v328 = vand.u32 %v176, 2147483648
      %v329 = vsel %vm327, %v328, %v326
      %v330 = vrsqrt.pop %v180
      %v331 = vmul.f32 %v330, %v180
      %v332 = vmul.f32 %v331, %v330
      %v333 = vmul.f32 0.5, %v332
      %v334 = vsub.f32 1.5, %v333
      %v335 = vmul.f32 %v330, %v334
      %v336 = vmul.f32 %v180, %v335
      %vm337 = vcmp.eq.f32.partialorder %v180, inf
      %v338 = vsel %vm337, %v180, %v336
      %vm339 = vcmp.eq.f32.partialorder %v180, 0.0
      %v340 = vand.u32 %v180, 2147483648
      %v341 = vsel %vm339, %v340, %v338
      %v342 = vsub.f32 %v329, %v341
      %v343 = vmul.f32 %v342, %v342
      %v345 = vrot.slane %v343, 2
      %v347 = vsel %vm310, %v345, 0.0
      %v348 = vrot.slane %v347, 4
      %v349 = vadd.f32 %v347, %v348
      %v350 = vrot.slane %v349, 2
      %v351 = vadd.f32 %v349, %v350
      %v352 = vrot.slane %v351, 1
      %v353 = vadd.f32 %v351, %v352
      %v354 = vadd.f32 %v317, %v353
      %v355 = vmul.f32 %v354, 5.0
      %v356 = vsub.f32 %v178, %v182
      %v357 = vmul.f32 %v356, %v356
      %v358 = vsel %vm310, %v357, 0.0
      %v359 = vrot.slane %v358, 4
      %v360 = vadd.f32 %v358, %v359
      %v361 = vrot.slane %v360, 2
      %v362 = vadd.f32 %v360, %v361
      %v363 = vrot.slane %v362, 1
      %v364 = vadd.f32 %v362, %v363
      %v365 = vrsqrt.pop %v178
      %v366 = vmul.f32 %v365, %v178
      %v367 = vmul.f32 %v366, %v365
      %v368 = vmul.f32 0.5, %v367
      %v369 = vsub.f32 1.5, %v368
      %v370 = vmul.f32 %v365, %v369
      %v371 = vmul.f32 %v178, %v370
      %vm372 = vcmp.eq.f32.partialorder %v178, inf
      %v373 = vsel %vm372, %v178, %v371
      %vm374 = vcmp.eq.f32.partialorder %v178, 0.0
      %v375 = vand.u32 %v178, 2147483648
      %v376 = vsel %vm374, %v375, %v373
      %v377 = vrsqrt.pop %v182
      %v378 = vmul.f32 %v377, %v182
      %v379 = vmul.f32 %v378, %v377
      %v380 = vmul.f32 0.5, %v379
      %v381 = vsub.f32 1.5, %v380
      %v382 = vmul.f32 %v377, %v381
      %v383 = vmul.f32 %v182, %v382
      %vm384 = vcmp.eq.f32.partialorder %v182, inf
      %v385 = vsel %vm384, %v182, %v383
      %vm386 = vcmp.eq.f32.partialorder %v182, 0.0
      %v387 = vand.u32 %v182, 2147483648
      %v388 = vsel %vm386, %v387, %v385
      %v389 = vsub.f32 %v376, %v388
      %v390 = vmul.f32 %v389, %v389
      %v392 = vrot.slane %v390, 2
      %v394 = vsel %vm310, %v392, 0.0
      %v395 = vrot.slane %v394, 4
      %v396 = vadd.f32 %v394, %v395
      %v397 = vrot.slane %v396, 2
      %v398 = vadd.f32 %v396, %v397
      %v399 = vrot.slane %v398, 1
      %v400 = vadd.f32 %v398, %v399
      %v401 = vadd.f32 %v364, %v400
      %v402 = vmul.f32 %v401, 5.0
      %v403 = vsub.f32 %v177, %v265
      %v404 = vsub.f32 %v179, %v306
      %v405 = vmul.f32 %v403, %v403
      %v406 = vmul.f32 %v404, %v404
      %v407 = vld [vmem:[%s152 + $0xa] sm:$0xff]
      %v408 = vld [vmem:[%s152 + $0x12] sm:$0xff]
      %v409 = vld [vmem:[%s152 + $0x1a] sm:$0xf]
      %v410 = vld [vmem:[%s157 + $0xa] sm:$0xff]
      %v411 = vld [vmem:[%s157 + $0x12] sm:$0xff]
      %v412 = vld [vmem:[%s157 + $0x1a] sm:$0xf]
      %v413 = vsub.f32 %v407, %v410
      %v414 = vsub.f32 %v408, %v411
      %v415 = vsub.f32 %v409, %v412
      %v416 = vmul.f32 %v413, %v413
      %v417 = vmul.f32 %v414, %v414
      %v418 = vmul.f32 %v415, %v415
      %vm419 = vcmask 400384
      %v420 = vsel %vm419, %v416, 0.0
      %v421 = vsel %vm419, %v417, 0.0
      %v422 = vadd.f32 %v420, %v421
      %vm423 = vcmask 396288
      %v424 = vsel %vm423, %v418, 0.0
      %v425 = vadd.f32 %v422, %v424
      %v426 = vrot.slane %v425, 4
      %v427 = vadd.f32 %v425, %v426
      %v428 = vrot.slane %v427, 2
      %v429 = vadd.f32 %v427, %v428
      %v430 = vrot.slane %v429, 1
      %v431 = vadd.f32 %v429, %v430
      %v432 = vadd.f32 %v355, %v405
      %v433 = vmul.f32 %v406, 0.5
      %v434 = vadd.f32 %v432, %v433
      %v435 = vadd.f32 %v402, %v406
      %v436 = vmul.f32 %v405, 0.5
      %v437 = vadd.f32 %v435, %v436
      %v438 = vsel %vm307, %v434, %v437
      %v439 = vadd.f32 %v438, %v431
      %v440 = vmul.f32 %v177, %v177
      %v441 = vmul.f32 %v179, %v179
      %v442 = vadd.f32 %v440, %v441
      %v443 = vmul.f32 %v442, 0.5
      %vm444 = vcmp.eq.f32.partialorder %v181, 1.0
      %v445 = vsel %vm444, %v439, %v443
      %vm446 = vcmask 393216
      %v447 = vsel %vm446, %v445, 0.0
      %448 = vadd.xlane.f32.xlu0 %v447
      %v449 = vpop.xlane.xlu0 %448
      %v450 = vrot.slane %v449, 4
      %v451 = vadd.f32 %v449, %v450
      %v452 = vrot.slane %v451, 2
      %v453 = vadd.f32 %v451, %v452
      %v454 = vrot.slane %v453, 1
      %v455 = vadd.f32 %v453, %v454
      %s456 = vtos %v455
      %v457 = vstv %s456
      %458 = vst [vmem:[%s161] sm:$0xff] %v457
      %p459 = scmp.lt.s32.totalorder %s13, 1
      %s460 = scalar_select %p459, %s13, 1
      %s461 = smul.addr %s460, 8
      %s462 = scalar_lea.vmem %s2, %s461
      // Predicated region
      $region29: #{yolov1_loss.1} parent=27 // pred_check
        %p463 = pneg %p83
      $region30: #{yolov1_loss.1} parent=27 // pred_check_branch
        %465 = sbr.rel (%p463) target = $region32
      $region31: #{yolov1_loss.1} parent=27 // pred_region
        _
      $region32: #{yolov1_loss.1} parent=27 // pred_fallthru
        _
    $region28: #{yolov1_loss.1} parent=5 // pred_fallthru
      _
    %p466 = scmp.le.s32.totalorder 2, %s8
    // Predicated region
    $region33: #{yolov1_loss.1} parent=5 // pred_check
      %p467 = pneg %p466
    $region34: #{yolov1_loss.1} parent=5 // pred_check_branch
      %469 = sbr.rel (%p467) target = $region36
    $region35: #{yolov1_loss.1} parent=5 // pred_region
      %s470 = ssub.s32 %s8, 2
      // Predicated region
      $region37: #{yolov1_loss.1} parent=35 // pred_check
        %p471 = pneg %p89
      $region38: #{yolov1_loss.1} parent=35 // pred_check_branch
        %473 = sbr.rel (%p471) target = $region40
      $region39: #{yolov1_loss.1} parent=35 // pred_region
        %p474 = scmp.lt.s32.totalorder %s14, 1
        %s475 = scalar_select %p474, %s14, 1
        %s476 = smul.addr %s475, 8
        %s477 = scalar_lea.vmem %s2, %s476
      $region40: #{yolov1_loss.1} parent=35 // pred_fallthru
        _
    $region36: #{yolov1_loss.1} parent=5 // pred_fallthru
      _
  $region6: #{yolov1_loss.1} parent=0 // loop_footer
    %s12 = sadd.s32 1, %s8
  $region7: #{yolov1_loss.1} parent=0 // loop_footer_branch
    %7 = sbr.rel target = $region3
  $region8: #{yolov1_loss.1} parent=0 // loop_exit
    _

</llo_original>
